<compile_context>
chip_gen: v6e
topology: v6e:2x2x1
jax: 0.10.0
libtpu: 0.0.40
codegen_flags: <defaults>
</compile_context>

<pallas_src>
import functools

import jax
import jax.numpy as jnp
from jax.experimental import pallas as pl
from jax.experimental.pallas import tpu as pltpu

INPUT_SIZE = 5
OUTPUT_SIZE = 100
LANE = 128      # lane width: pad out_features so the output tile is lane-dense
SUBLANE = 8     # f32 sublanes: pad the contraction dim to a full vreg

DEBUG_PRINT_SHAPES = False  # PyTorch module printed shapes every call; shapes
                            # are static, so keep it behind a debug flag.


def _round_up(n, m):
    return ((n + m - 1) // m) * m


def _linear_kernel(x_ref, w_ref, b_ref, o_ref, xpad_ref):
    # Zero-pad x's contraction dim (K=5 -> 8) into VMEM scratch so the MXU
    # sees a clean (B, 8) x (8, 128) pair with no odd-shaped sublane loads.
    xpad_ref[...] = jnp.zeros_like(xpad_ref)
    xpad_ref[:, : x_ref.shape[1]] = x_ref[...]
    acc = jnp.dot(xpad_ref[...], w_ref[...], preferred_element_type=jnp.float32)
    b = b_ref[...]                                   # (8, N_pad), pre-broadcast
    if acc.shape[0] == b.shape[0]:
        o_ref[...] = (acc + b).astype(o_ref.dtype)   # pure vreg-aligned vadd
    else:  # general batch: shapes are static at trace time
        o_ref[...] = (acc + b[:1, :]).astype(o_ref.dtype)


@functools.partial(jax.jit, static_argnames=("out_features",))
def _forward_impl(x, w_padded, b_padded, out_features):
    """out = x @ W_padded + b_padded, sliced back to out_features columns.

    x:        (B, K)      float32
    w_padded: (K_pad, N_pad) float32  (pre-transposed + zero-padded at init)
    b_padded: (8, N_pad)  float32     (pre-broadcast + zero-padded at init)
    """
    B, _ = x.shape
    k_pad, n_pad = w_padded.shape

    cost = pl.CostEstimate(
        flops=2 * B * k_pad * n_pad,
        transcendentals=0,
        bytes_accessed=4 * (x.size + w_padded.size + b_padded.size + B * n_pad),
    )

    vmem_spec = pl.BlockSpec(memory_space=pltpu.MemorySpace.VMEM)
    out_padded = pl.pallas_call(
        _linear_kernel,
        out_shape=jax.ShapeDtypeStruct((B, n_pad), x.dtype),
        in_specs=[vmem_spec, vmem_spec, vmem_spec],
        out_specs=vmem_spec,
        scratch_shapes=[pltpu.VMEM((B, k_pad), jnp.float32)],
        cost_estimate=cost,
    )(x, w_padded, b_padded)

    # Padding strip stays INSIDE the same jit as the pallas_call, so XLA fuses
    # it into the result copy instead of paying a separate dispatch.
    return out_padded[:, :out_features]


class Model:
    """JAX/Pallas re-implementation of the PyTorch Model (one nn.Linear)."""

    def __init__(self, input_size, output_size, key):
        kw, kb = jax.random.split(key)
        # Deterministic init mimicking nn.Linear's U(-1/sqrt(in), 1/sqrt(in)).
        bound = 1.0 / (input_size ** 0.5)
        # Canonical PyTorch-layout parameters (kept for reference checks).
        # NOTE: if these are ever updated, regenerate the padded copies below.
        self.weight = jax.random.uniform(
            kw, (output_size, input_size), jnp.float32, -bound, bound)
        self.bias = jax.random.uniform(
            kb, (output_size,), jnp.float32, -bound, bound)

        self.out_features = output_size
        n_pad = _round_up(output_size, LANE)
        k_pad = _round_up(input_size, SUBLANE)

        # One-time layout prep (hoisted out of the forward path):
        #   weight: (out, in) -> (in, out) -> zero-pad to (k_pad, n_pad)
        #   bias:   (out,)    -> broadcast to 8 sublanes, zero-pad lanes
        w_t = self.weight.T                                        # (in, out)
        self.w_padded = jnp.zeros((k_pad, n_pad), jnp.float32)
        self.w_padded = self.w_padded.at[:input_size, :output_size].set(w_t)
        self.b_padded = jnp.zeros((SUBLANE, n_pad), jnp.float32)
        self.b_padded = self.b_padded.at[:, :output_size].set(
            jnp.broadcast_to(self.bias, (SUBLANE, output_size)))

    def forward(self, x):
        out = _forward_impl(x, self.w_padded, self.b_padded, self.out_features)
        if DEBUG_PRINT_SHAPES:
            print("\tIn Model: input size", tuple(x.shape),
                  "output size", tuple(out.shape))
        return out


if __name__ == "__main__":
    key = jax.random.PRNGKey(0)
    k_param, k_input = jax.random.split(key)

    batch = 8
    model = Model(INPUT_SIZE, OUTPUT_SIZE, k_param)
    x = jax.random.normal(k_input, (batch, INPUT_SIZE), dtype=jnp.float32)

    out = model.forward(x)
    out = jax.block_until_ready(out)

    # Sanity check against plain-JAX reference (original PyTorch-layout params).
    ref = x @ model.weight.T + model.bias
    assert out.shape == (batch, OUTPUT_SIZE)
    assert jnp.allclose(out, ref, atol=1e-5, rtol=1e-5)

    print("KERNEL_OK")
</pallas_src>

<mosaic_0001>
module attributes {stable_mosaic.version = 11 : i64} {
  func.func @_linear_kernel(%arg0: memref<8x5xf32, #tpu.memory_space<vmem>>, %arg1: memref<8x128xf32, #tpu.memory_space<vmem>>, %arg2: memref<8x128xf32, #tpu.memory_space<vmem>>, %arg3: memref<8x128xf32, #tpu.memory_space<vmem>>, %arg4: memref<8x8xf32, #tpu.memory_space<vmem>>) attributes {dimension_semantics = [], scalar_prefetch = 0 : i64, scratch_operands = 1 : i64, tpu.core_type = #tpu.core_type<tc>} {
    %cst = arith.constant 0.000000e+00 : f32
    %0 = vector.broadcast %cst : f32 to vector<8x8xf32>
    %c0 = arith.constant 0 : index
    %c0_0 = arith.constant 0 : index
    %1 = vector.load %arg4[%c0, %c0_0] : memref<8x8xf32, #tpu.memory_space<vmem>>, vector<8x8xf32>
    tpu.vector_store %arg4[%c0, %c0_0], %0 {strides = array<i32>} : memref<8x8xf32, #tpu.memory_space<vmem>>, vector<8x8xf32>,
    %c0_1 = arith.constant 0 : index
    %c0_2 = arith.constant 0 : index
    %2 = vector.load %arg0[%c0_1, %c0_2] : memref<8x5xf32, #tpu.memory_space<vmem>>, vector<8x5xf32>
    %c0_3 = arith.constant 0 : index
    %c0_4 = arith.constant 0 : index
    %3 = vector.load %arg4[%c0_3, %c0_4] : memref<8x8xf32, #tpu.memory_space<vmem>>, vector<8x5xf32>
    tpu.vector_store %arg4[%c0_3, %c0_4], %2 {strides = array<i32>} : memref<8x8xf32, #tpu.memory_space<vmem>>, vector<8x5xf32>,
    %c0_5 = arith.constant 0 : index
    %c0_6 = arith.constant 0 : index
    %4 = vector.load %arg4[%c0_5, %c0_6] : memref<8x8xf32, #tpu.memory_space<vmem>>, vector<8x8xf32>
    %c0_7 = arith.constant 0 : index
    %c0_8 = arith.constant 0 : index
    %5 = vector.load %arg1[%c0_7, %c0_8] : memref<8x128xf32, #tpu.memory_space<vmem>>, vector<8x128xf32>
    %cst_9 = arith.constant dense<0.000000e+00> : vector<8x128xf32>
    %6 = tpu.matmul %4, %5, %cst_9 {dimension_numbers = #tpu.dot_dimension_numbers<[1], [0], [0], [1], [0, 0, 1, 1], [], []>} : vector<8x8xf32>, vector<8x128xf32>, vector<8x128xf32> -> vector<8x128xf32>
    %c0_10 = arith.constant 0 : index
    %c0_11 = arith.constant 0 : index
    %7 = vector.load %arg2[%c0_10, %c0_11] : memref<8x128xf32, #tpu.memory_space<vmem>>, vector<8x128xf32>
    %8 = arith.addf %6, %7 : vector<8x128xf32>
    %c0_12 = arith.constant 0 : index
    %c0_13 = arith.constant 0 : index
    %9 = vector.load %arg3[%c0_12, %c0_13] : memref<8x128xf32, #tpu.memory_space<vmem>>, vector<8x128xf32>
    tpu.vector_store %arg3[%c0_12, %c0_13], %8 {strides = array<i32>} : memref<8x128xf32, #tpu.memory_space<vmem>>, vector<8x128xf32>,
    return
  }
}

</mosaic_0001>

<llo_original>
// kernel: _forward_impl.1
$region0: #{_forward_impl.1}
  #allocation0 [shape = 'u32[]', space=smem, size = 0x4, offset = 0x4, fixed_abs, tag = 'smem constant byte address 0x4 - core index']
  #allocation1 [shape = 'u32[144,128]{1,0:T(1,128)}', space=vmem, size = 0x12000, scoped, tag = 'internal scratch']
  #allocation2 [shape = 'f32[8,8]{1,0:T(8,128)}', space=vmem, size = 0x1000, scoped, tag = 'scratch operand']
  %s0 = inlined_call_operand.hbm [shape: f32[8,5], index: 0, kind: input, shape index: {}]
  %s1 = inlined_call_operand.hbm [shape: f32[8,128], index: 1, kind: input, shape index: {}]
  %s2 = inlined_call_operand.hbm [shape: f32[8,128], index: 2, kind: input, shape index: {}]
  %s3 = inlined_call_operand.hbm [shape: f32[8,128], index: 3, kind: output, shape index: {}]
  %s4 = sld [smem:[#allocation0]]
  $region34: #{_forward_impl.1} parent=0
    _
  %s6 = ssub.s32 1, %s4
  %s7 = scalar_select 0, %s6, %s4
  $region1: #{_forward_impl.1} parent=0
    #allocation3 [shape = 'u8[4096]{0}', space=vmem, size = 0x1000, scoped, tag = 'input window, operand 0, single buffered']
    #allocation4 [shape = 's32[1]{0}', space=sflag, size = 0x4, scoped, tag = 'scoped memory for _forward_impl.1']
    #allocation5 [shape = 's32[1]{0}', space=sflag, size = 0x4, scoped, tag = 'scoped memory for _forward_impl.1']
    #allocation6 [shape = 'u8[4096]{0}', space=vmem, size = 0x1000, scoped, tag = 'input window, operand 1, single buffered']
    #allocation7 [shape = 's32[1]{0}', space=sflag, size = 0x4, scoped, tag = 'scoped memory for _forward_impl.1']
    #allocation8 [shape = 'u8[4096]{0}', space=vmem, size = 0x1000, scoped, tag = 'input window, operand 2, single buffered']
    #allocation9 [shape = 'u8[4096]{0}', space=vmem, size = 0x1000, scoped, tag = 'output window, operand 0, single buffered']
    %8 = vsyncpa [#allocation4], 0
    %9 = vsyncpa [#allocation7], 0
    %10 = vsyncpa [#allocation5], 0
    // Predicated region
    $region2: #{_forward_impl.1} parent=1 // pred_check
      _
    $region3: #{_forward_impl.1} parent=1 // pred_check_branch
      %12 = sbr.rel (0) target = $region5
    $region4: #{_forward_impl.1} parent=1 // pred_region
      %s14 = ssub.s32 128, 128
      %15 = vsyncadd [#allocation4], %s14
      %s17 = sshll.u32 [#allocation3], 4
      %s18 = int_to_ptr.vmem [resolvable:$true] %s17
      %20 = dma.hbm_to_vmem [thread:$0]  %s0, 128, %s18, [#allocation4]
    $region5: #{_forward_impl.1} parent=1 // pred_fallthru
      _
    // Predicated region
    $region6: #{_forward_impl.1} parent=1 // pred_check
      _
    $region7: #{_forward_impl.1} parent=1 // pred_check_branch
      %22 = sbr.rel (0) target = $region9
    $region8: #{_forward_impl.1} parent=1 // pred_region
      %s24 = ssub.s32 128, 128
      %25 = vsyncadd [#allocation7], %s24
      %s27 = sshll.u32 [#allocation6], 4
      %s28 = int_to_ptr.vmem [resolvable:$true] %s27
      %30 = dma.hbm_to_vmem [thread:$0]  %s1, 128, %s28, [#allocation7]
    $region9: #{_forward_impl.1} parent=1 // pred_fallthru
      _
    // Predicated region
    $region10: #{_forward_impl.1} parent=1 // pred_check
      _
    $region11: #{_forward_impl.1} parent=1 // pred_check_branch
      %32 = sbr.rel (0) target = $region13
    $region12: #{_forward_impl.1} parent=1 // pred_region
      %s34 = ssub.s32 128, 128
      %35 = vsyncadd [#allocation7], %s34
      %s37 = sshll.u32 [#allocation8], 4
      %s38 = int_to_ptr.vmem [resolvable:$true] %s37
      %40 = dma.hbm_to_vmem [thread:$0]  %s2, 128, %s38, [#allocation7]
    $region13: #{_forward_impl.1} parent=1 // pred_fallthru
      _
    // Predicated region
    $region14: #{_forward_impl.1} parent=1 // pred_check
      _
    $region15: #{_forward_impl.1} parent=1 // pred_check_branch
      %42 = sbr.rel (0) target = $region17
    $region16: #{_forward_impl.1} parent=1 // pred_region
      %43 = dma.done [#allocation4], 128
    $region17: #{_forward_impl.1} parent=1 // pred_fallthru
      _
    // Predicated region
    $region18: #{_forward_impl.1} parent=1 // pred_check
      _
    $region19: #{_forward_impl.1} parent=1 // pred_check_branch
      %45 = sbr.rel (0) target = $region21
    $region20: #{_forward_impl.1} parent=1 // pred_region
      %46 = dma.done [#allocation7], 128
    $region21: #{_forward_impl.1} parent=1 // pred_fallthru
      _
    // Predicated region
    $region22: #{_forward_impl.1} parent=1 // pred_check
      _
    $region23: #{_forward_impl.1} parent=1 // pred_check_branch
      %48 = sbr.rel (0) target = $region25
    $region24: #{_forward_impl.1} parent=1 // pred_region
      %49 = dma.done [#allocation7], 128
    $region25: #{_forward_impl.1} parent=1 // pred_fallthru
      _
    %vm50 = vcmask 64512
    %51 = vst.msk [vmem:[#allocation2] sm:$0xff] %vm50, 0.0
    %v52 = vld [vmem:[#allocation3] sm:$0xff]
    %vm53 = vcmask 39936
    %54 = vst.msk [vmem:[#allocation2] sm:$0xff] %vm53, %v52
    %v55 = vld [vmem:[#allocation2] sm:$0xff]
    %v56 = vld [vmem:[#allocation6] sm:$0xff]
    %v57 = vld [vmem:[#allocation8] sm:$0xff]
    %v59 = vsel %vm50, %v55, 0
    %61 = vmatprep.subr.mxu0 0.0
    %62 = vmatpush1.msra.mxu0 0.0
    %63 = vmatprep.subr.mxu0 0.0
    %64 = vmatpush1.msra.mxu0 0.0
    %65 = vmatprep.subr.mxu0 0.0
    %66 = vmatpush1.msra.mxu0 0.0
    %67 = vmatprep.subr.mxu0 0.0
    %68 = vmatpush1.msra.mxu0 0.0
    %69 = vmatprep.subr.mxu0 0.0
    %70 = vmatpush1.msra.mxu0 0.0
    %71 = vmatprep.subr.mxu0 0.0
    %72 = vmatpush1.msra.mxu0 0.0
    %73 = vmatprep.subr.mxu0 0.0
    %74 = vmatpush1.msra.mxu0 0.0
    %75 = vmatprep.subr.mxu0 0.0
    %76 = vmatpush1.msra.mxu0 0.0
    %77 = vmatprep.subr.mxu0 0.0
    %78 = vmatpush1.msra.mxu0 0.0
    %79 = vmatprep.subr.mxu0 0.0
    %80 = vmatpush1.msra.mxu0 0.0
    %81 = vmatprep.subr.mxu0 0.0
    %82 = vmatpush1.msra.mxu0 0.0
    %83 = vmatprep.subr.mxu0 0.0
    %84 = vmatpush1.msra.mxu0 0.0
    %85 = vmatprep.subr.mxu0 0.0
    %86 = vmatpush1.msra.mxu0 0.0
    %87 = vmatprep.subr.mxu0 0.0
    %88 = vmatpush1.msra.mxu0 0.0
    %89 = vmatprep.subr.mxu0 0.0
    %90 = vmatpush1.msra.mxu0 0.0
    %91 = vmatprep.subr.mxu0 0.0
    %92 = vmatpush1.msra.mxu0 %v56
    %93 = vmatprep.subr.mxu0 0.0
    %94 = vmatpush2.msra.mxu0 0.0
    %95 = vmatprep.subr.mxu0 0.0
    %96 = vmatpush2.msra.mxu0 0.0
    %97 = vmatprep.subr.mxu0 0.0
    %98 = vmatpush2.msra.mxu0 0.0
    %99 = vmatprep.subr.mxu0 0.0
    %100 = vmatpush2.msra.mxu0 0.0
    %101 = vmatprep.subr.mxu0 0.0
    %102 = vmatpush2.msra.mxu0 0.0
    %103 = vmatprep.subr.mxu0 0.0
    %104 = vmatpush2.msra.mxu0 0.0
    %105 = vmatprep.subr.mxu0 0.0
    %106 = vmatpush2.msra.mxu0 0.0
    %107 = vmatprep.subr.mxu0 0.0
    %108 = vmatpush2.msra.mxu0 0.0
    %109 = vmatprep.subr.mxu0 0.0
    %110 = vmatpush2.msra.mxu0 0.0
    %111 = vmatprep.subr.mxu0 0.0
    %112 = vmatpush2.msra.mxu0 0.0
    %113 = vmatprep.subr.mxu0 0.0
    %114 = vmatpush2.msra.mxu0 0.0
    %115 = vmatprep.subr.mxu0 0.0
    %116 = vmatpush2.msra.mxu0 0.0
    %117 = vmatprep.subr.mxu0 0.0
    %118 = vmatpush2.msra.mxu0 0.0
    %119 = vmatprep.subr.mxu0 0.0
    %120 = vmatpush2.msra.mxu0 0.0
    %121 = vmatprep.subr.mxu0 0.0
    %122 = vmatpush2.msra.mxu0 0.0
    %123 = vmatprep.subr.mxu0 0.0
    %124 = vmatpush2.msra.mxu0 0.0
    %125 = vmatprep.mubr.f32.mxu0 0.0
    %126 = vmatmul.mubr.f32.gmra.mxu0 %v59
    %v127 = vpop.f32.mrf.mxu0
    %v128 = vadd.f32 %v57, %v127
    %v129 = vpop.f32.mrf.mxu0
    %130 = vdwg.mxu0
    %131 = vst [vmem:[#allocation9] sm:$0xff] %v128
    // Predicated region
    $region26: #{_forward_impl.1} parent=1 // pred_check
      _
    $region27: #{_forward_impl.1} parent=1 // pred_check_branch
      %133 = sbr.rel (0) target = $region29
    $region28: #{_forward_impl.1} parent=1 // pred_region
      %s135 = ssub.s32 128, 128
      %136 = vsyncadd [#allocation5], %s135
      %s138 = sshll.u32 [#allocation9], 4
      %s139 = int_to_ptr.vmem [resolvable:$true] %s138
      %141 = dma.vmem_to_hbm [thread:$0]  %s139, 128, %s3, [#allocation5]
    $region29: #{_forward_impl.1} parent=1 // pred_fallthru
      _
    // Predicated region
    $region30: #{_forward_impl.1} parent=1 // pred_check
      _
    $region31: #{_forward_impl.1} parent=1 // pred_check_branch
      %143 = sbr.rel (0) target = $region33
    $region32: #{_forward_impl.1} parent=1 // pred_region
      %144 = dma.done [#allocation5], 128
    $region33: #{_forward_impl.1} parent=1 // pred_fallthru
      _
    %145 = vsyncpa [#allocation4], 1
    %146 = vsyncpa [#allocation7], 1
    %147 = vsyncpa [#allocation5], 1

</llo_original>
